<compile_context>
chip_gen: v5e
topology: v5e:2x2
jax: 0.10.0
libtpu: 0.0.40
codegen_flags: <defaults>
</compile_context>

<pallas_src>
import jax
import jax.numpy as jnp
from jax.experimental import pallas as pl
from jax.experimental.pallas import tpu as pltpu

EPS = 1e-5  # InstanceNorm2d default eps


def output_transition_kernel(col_ref, w1_ref, w2_ref, b2_ref, o_ref):
    """One batch element per grid step (all channel-major, spatial on lanes).

    col_ref: (1, 25*Cin, H*W)  im2col columns of the padded input
    w1_ref:  (hid, 25*Cin)     conv1 weights, k-order = (dy, dx, cin)
    w2_ref:  (outC, hid)       conv2 (1x1) weights
    b2_ref:  (outC, 1)         conv2 bias
    o_ref:   (1, outC, H*W)    output
    """
    col = col_ref[0]                                     # (25*Cin, H*W)

    # conv1: single lane-dense K = 25*Cin contraction on the MXU.
    # (conv1 bias intentionally omitted — no-op under InstanceNorm.)
    h = jnp.dot(w1_ref[...], col,
                preferred_element_type=jnp.float32)      # (hid, H*W)

    # InstanceNorm2d(affine=False): per-channel stats over spatial = lane axis,
    # biased variance, eps = 1e-5.
    mean = jnp.mean(h, axis=-1, keepdims=True)           # (hid, 1)
    c = h - mean
    var = jnp.mean(c * c, axis=-1, keepdims=True)
    y = c * jax.lax.rsqrt(var + EPS)

    # ELU(alpha=1.0)
    y = jnp.where(y > 0, y, jnp.exp(y) - 1.0)

    # conv2: 1x1 conv == (outC, hid) @ (hid, H*W) + bias.
    out = jnp.dot(w2_ref[...], y,
                  preferred_element_type=jnp.float32) + b2_ref[...]

    o_ref[0] = out.astype(o_ref.dtype)


@jax.jit
def output_transition_forward(x_nchw, w1_oihw, w2_oihw, b2):
    """OutputTransition.forward on an NCHW input, returns NCHW output.

    Note: conv1's bias is not an argument — it is mathematically cancelled by
    the following InstanceNorm2d(affine=False).
    """
    N, Cin, H, W = x_nchw.shape
    hid = w1_oihw.shape[0]
    outC = w2_oihw.shape[0]
    K = w1_oihw.shape[2]          # 5
    P = K // 2                    # padding = 2
    HW = H * W
    KK = K * K * Cin              # contraction depth

    x = x_nchw.astype(jnp.float32)
    x_pad = jnp.pad(x, ((0, 0), (0, 0), (P, P), (P, P)))

    # im2col columns (layout plumbing in XLA, ~100 KiB per batch element):
    # col[n, (dy*K+dx)*Cin + i, h*W + w] = x_pad[n, i, h+dy, w+dx]
    patches = [x_pad[:, :, dy:dy + H, dx:dx + W]
               for dy in range(K) for dx in range(K)]
    col = jnp.stack(patches, axis=1).reshape(N, KK, HW)

    # conv1 weights -> (hid, 25*Cin) matching the col k-ordering (dy, dx, cin).
    w1_2d = jnp.transpose(w1_oihw, (0, 2, 3, 1)).reshape(hid, KK)
    w1_2d = w1_2d.astype(jnp.float32)
    w2_2d = w2_oihw.reshape(outC, hid).astype(jnp.float32)
    b2_2d = b2.reshape(outC, 1).astype(jnp.float32)

    out = pl.pallas_call(
        output_transition_kernel,
        out_shape=jax.ShapeDtypeStruct((N, outC, HW), jnp.float32),
        grid_spec=pltpu.PrefetchScalarGridSpec(
            num_scalar_prefetch=0,
            grid=(N,),
            in_specs=[
                pl.BlockSpec((1, KK, HW), lambda n: (n, 0, 0)),
                pl.BlockSpec((hid, KK), lambda n: (0, 0)),
                pl.BlockSpec((outC, hid), lambda n: (0, 0)),
                pl.BlockSpec((outC, 1), lambda n: (0, 0)),
            ],
            out_specs=pl.BlockSpec((1, outC, HW), lambda n: (n, 0, 0)),
        ),
        compiler_params=pltpu.CompilerParams(
            dimension_semantics=("parallel",)),
    )(col, w1_2d, w2_2d, b2_2d)

    # Free (metadata-only) reshape back to NCHW.
    return out.reshape(N, outC, H, W)


@jax.jit
def reference_forward(x, w1, b1, w2, b2):
    """Pure-JAX reference mirroring PyTorch OutputTransition semantics."""
    y = jax.lax.conv_general_dilated(
        x, w1, window_strides=(1, 1), padding=((2, 2), (2, 2)),
        dimension_numbers=("NCHW", "OIHW", "NCHW"))
    y = y + b1.reshape(1, -1, 1, 1)
    mean = jnp.mean(y, axis=(2, 3), keepdims=True)
    var = jnp.mean((y - mean) ** 2, axis=(2, 3), keepdims=True)
    y = (y - mean) / jnp.sqrt(var + EPS)
    y = jnp.where(y > 0, y, jnp.exp(y) - 1.0)                 # ELU
    out = jax.lax.conv_general_dilated(
        y, w2, window_strides=(1, 1), padding=((0, 0), (0, 0)),
        dimension_numbers=("NCHW", "OIHW", "NCHW"))
    return out + b2.reshape(1, -1, 1, 1)


if __name__ == "__main__":
    # OutputTransition(inChans=4, outChans=1, hidChans=2)
    N, Cin, H, W = 2, 4, 16, 16
    hid, outC = 2, 1

    key = jax.random.PRNGKey(0)
    kx, kw1, kb1, kw2, kb2 = jax.random.split(key, 5)
    x = jax.random.normal(kx, (N, Cin, H, W), dtype=jnp.float32)
    # PyTorch parameter layouts: conv weights OIHW, biases (O,).
    w1 = jax.random.normal(kw1, (hid, Cin, 5, 5), dtype=jnp.float32) * 0.1
    b1 = jax.random.normal(kb1, (hid,), dtype=jnp.float32) * 0.1
    w2 = jax.random.normal(kw2, (outC, hid, 1, 1), dtype=jnp.float32) * 0.1
    b2 = jax.random.normal(kb2, (outC,), dtype=jnp.float32) * 0.1

    # Kernel drops conv1 bias (cancelled by InstanceNorm); reference keeps it.
    out = jax.block_until_ready(output_transition_forward(x, w1, w2, b2))
    ref = jax.block_until_ready(reference_forward(x, w1, b1, w2, b2))

    assert out.shape == (N, outC, H, W)
    err = float(jnp.max(jnp.abs(out - ref)))
    assert err < 1e-4, f"mismatch vs reference: {err}"

    print("KERNEL_OK")
</pallas_src>

<mosaic_0001>
module attributes {stable_mosaic.version = 11 : i64} {
  func.func @output_transition_kernel(%arg0: i32, %arg1: memref<1x100x256xf32, #tpu.memory_space<vmem>>, %arg2: memref<2x100xf32, #tpu.memory_space<vmem>>, %arg3: memref<1x2xf32, #tpu.memory_space<vmem>>, %arg4: memref<1x1xf32, #tpu.memory_space<vmem>>, %arg5: memref<1x1x256xf32, #tpu.memory_space<vmem>>) attributes {dimension_semantics = [#tpu.dimension_semantics<parallel>], iteration_bounds = array<i64: 2>, scalar_prefetch = 0 : i64, scratch_operands = 0 : i64, tpu.core_type = #tpu.core_type<tc>, window_params = [{transform_indices = @transform_0, window_bounds = array<i64: 1, 100, 256>}, {pipeline_mode = #tpu.pipeline_mode<synchronous>, transform_indices = @transform_1, window_bounds = array<i64: 2, 100>}, {pipeline_mode = #tpu.pipeline_mode<synchronous>, transform_indices = @transform_2, window_bounds = array<i64: 1, 2>}, {pipeline_mode = #tpu.pipeline_mode<synchronous>, transform_indices = @transform_3, window_bounds = array<i64: 1, 1>}, {transform_indices = @transform_4, window_bounds = array<i64: 1, 1, 256>}]} {
    %c0 = arith.constant 0 : index
    %c0_0 = arith.constant 0 : index
    %c0_1 = arith.constant 0 : index
    %0 = vector.load %arg1[%c0, %c0_0, %c0_1] : memref<1x100x256xf32, #tpu.memory_space<vmem>>, vector<1x100x256xf32>
    %1 = vector.shape_cast %0 : vector<1x100x256xf32> to vector<100x256xf32>
    %c0_2 = arith.constant 0 : index
    %c0_3 = arith.constant 0 : index
    %2 = vector.load %arg2[%c0_2, %c0_3] : memref<2x100xf32, #tpu.memory_space<vmem>>, vector<2x100xf32>
    %cst = arith.constant dense<0.000000e+00> : vector<2x256xf32>
    %3 = tpu.matmul %2, %1, %cst {dimension_numbers = #tpu.dot_dimension_numbers<[1], [0], [0], [1], [0, 0, 1, 1], [], []>} : vector<2x100xf32>, vector<100x256xf32>, vector<2x256xf32> -> vector<2x256xf32>
    %cst_4 = arith.constant dense<0.000000e+00> : vector<2xf32>
    %4 = vector.multi_reduction <add>, %3, %cst_4 [1] : vector<2x256xf32> to vector<2xf32>
    %5 = vector.shape_cast %4 : vector<2xf32> to vector<2x1xf32>
    %cst_5 = arith.constant 2.560000e+02 : f32
    %6 = vector.broadcast %cst_5 : f32 to vector<2x1xf32>
    %7 = arith.divf %5, %6 : vector<2x1xf32>
    %8 = vector.broadcast %7 : vector<2x1xf32> to vector<2x256xf32>
    %9 = arith.subf %3, %8 : vector<2x256xf32>
    %10 = arith.mulf %9, %9 : vector<2x256xf32>
    %cst_6 = arith.constant dense<0.000000e+00> : vector<2xf32>
    %11 = vector.multi_reduction <add>, %10, %cst_6 [1] : vector<2x256xf32> to vector<2xf32>
    %12 = vector.shape_cast %11 : vector<2xf32> to vector<2x1xf32>
    %cst_7 = arith.constant 2.560000e+02 : f32
    %13 = vector.broadcast %cst_7 : f32 to vector<2x1xf32>
    %14 = arith.divf %12, %13 : vector<2x1xf32>
    %cst_8 = arith.constant 9.99999974E-6 : f32
    %15 = vector.broadcast %cst_8 : f32 to vector<2x1xf32>
    %16 = arith.addf %14, %15 : vector<2x1xf32>
    %17 = math.rsqrt %16 : vector<2x1xf32>
    %18 = vector.broadcast %17 : vector<2x1xf32> to vector<2x256xf32>
    %19 = arith.mulf %9, %18 : vector<2x256xf32>
    %cst_9 = arith.constant 0.000000e+00 : f32
    %20 = vector.broadcast %cst_9 : f32 to vector<2x256xf32>
    %21 = arith.cmpf ogt, %19, %20 : vector<2x256xf32>
    %22 = math.exp %19 : vector<2x256xf32>
    %cst_10 = arith.constant 1.000000e+00 : f32
    %23 = vector.broadcast %cst_10 : f32 to vector<2x256xf32>
    %24 = arith.subf %22, %23 : vector<2x256xf32>
    %25 = arith.select %21, %19, %24 : vector<2x256xi1>, vector<2x256xf32>
    %c0_11 = arith.constant 0 : index
    %c0_12 = arith.constant 0 : index
    %26 = vector.load %arg3[%c0_11, %c0_12] : memref<1x2xf32, #tpu.memory_space<vmem>>, vector<1x2xf32>
    %cst_13 = arith.constant dense<0.000000e+00> : vector<1x256xf32>
    %27 = tpu.matmul %26, %25, %cst_13 {dimension_numbers = #tpu.dot_dimension_numbers<[1], [0], [0], [1], [0, 0, 1, 1], [], []>} : vector<1x2xf32>, vector<2x256xf32>, vector<1x256xf32> -> vector<1x256xf32>
    %c0_14 = arith.constant 0 : index
    %c0_15 = arith.constant 0 : index
    %28 = vector.load %arg4[%c0_14, %c0_15] : memref<1x1xf32, #tpu.memory_space<vmem>>, vector<1x1xf32>
    %29 = vector.broadcast %28 : vector<1x1xf32> to vector<1x256xf32>
    %30 = arith.addf %27, %29 : vector<1x256xf32>
    %c0_16 = arith.constant 0 : index
    %c0_17 = arith.constant 0 : index
    %c0_18 = arith.constant 0 : index
    %31 = vector.load %arg5[%c0_16, %c0_17, %c0_18] : memref<1x1x256xf32, #tpu.memory_space<vmem>>, vector<1x1x256xf32>
    %32 = vector.shape_cast %31 : vector<1x1x256xf32> to vector<1x256xf32>
    %33 = vector.shape_cast %30 : vector<1x256xf32> to vector<1x1x256xf32>
    tpu.vector_store %arg5[%c0_16, %c0_17, %c0_18], %33 {strides = array<i32>} : memref<1x1x256xf32, #tpu.memory_space<vmem>>, vector<1x1x256xf32>,
    return
  }
  func.func @transform_0(%arg0: i32) -> (i32, i32, i32) {
    %c0_i32 = arith.constant 0 : i32
    %c0_i32_0 = arith.constant 0 : i32
    %c0_i32_1 = arith.constant 0 : i32
    return %arg0, %c0_i32, %c0_i32_0 : i32, i32, i32
  }
  func.func @transform_1(%arg0: i32) -> (i32, i32) {
    %c0_i32 = arith.constant 0 : i32
    %c0_i32_0 = arith.constant 0 : i32
    %c0_i32_1 = arith.constant 0 : i32
    return %c0_i32, %c0_i32_0 : i32, i32
  }
  func.func @transform_2(%arg0: i32) -> (i32, i32) {
    %c0_i32 = arith.constant 0 : i32
    %c0_i32_0 = arith.constant 0 : i32
    %c0_i32_1 = arith.constant 0 : i32
    return %c0_i32, %c0_i32_0 : i32, i32
  }
  func.func @transform_3(%arg0: i32) -> (i32, i32) {
    %c0_i32 = arith.constant 0 : i32
    %c0_i32_0 = arith.constant 0 : i32
    %c0_i32_1 = arith.constant 0 : i32
    return %c0_i32, %c0_i32_0 : i32, i32
  }
  func.func @transform_4(%arg0: i32) -> (i32, i32, i32) {
    %c0_i32 = arith.constant 0 : i32
    %c0_i32_0 = arith.constant 0 : i32
    %c0_i32_1 = arith.constant 0 : i32
    return %arg0, %c0_i32, %c0_i32_0 : i32, i32, i32
  }
}

</mosaic_0001>

<llo_original>
// kernel: output_transition_forward.1
$region0: #{output_transition_forward.1}
  #allocation0 [shape = 'u32[]', space=smem, size = 0x4, offset = 0x4, fixed_abs, tag = 'smem constant byte address 0x4 - core index']
  #allocation1 [shape = 'u32[72,128]{1,0:T(1,128)}', space=vmem, size = 0x9000, scoped, tag = 'internal scratch']
  #allocation2 [shape = 'f32[1,1]{1,0:T(1,128)S(1)}', space=vmem, size = 0x200, scoped, tag = 'scoped memory for output_transition_forward.1']
  %s0 = inlined_call_operand.vmem [shape: f32[2,100,256], index: 0, kind: input, shape index: {}]
  %s1 = inlined_call_operand.vmem [shape: f32[2,100], index: 1, kind: input, shape index: {}]
  %s2 = inlined_call_operand.vmem [shape: f32[1,2], index: 2, kind: input, shape index: {}]
  %s3 = inlined_call_operand.<no memory space> [shape: f32[1,1], index: 3, kind: input, shape index: {}]
  %s4 = inlined_call_operand.vmem [shape: f32[2,1,256], index: 4, kind: output, shape index: {}]
  %s5 = sld [smem:[#allocation0]]
  $region49: #{output_transition_forward.1} parent=0
    _
  %s7 = ssub.s32 1, %s5
  %s8 = scalar_select 0, %s7, %s5
  %v9 = vstv %s3
  %10 = vst [vmem:[#allocation2] sm:$0x1] %v9
  loop: start=0, step=1, limit=4
  $region2: #{output_transition_forward.1} parent=0 // loop_pre_header
    _
  $region3: #{output_transition_forward.1} parent=0 // loop_header
    %s12 = sphi 0, %s16
    %p13 = scmp.ge.s32.totalorder %s12, 4
    %s22 = sphi 0, %s24
    %s25 = sphi 0, %s22
    %s26 = sphi 0, %s25
    %s42 = sphi 0, %s26
    %s46 = sphi 0, %s46
    %s48 = sphi 0, %s46
    %s49 = sphi 0, %s48
    %s63 = sphi 0, %s49
    %s67 = sphi 0, %s67
    %s69 = sphi 0, %s67
    %s70 = sphi 0, %s69
    %s84 = sphi 0, %s70
    %s88 = sphi 0, %s88
    %s90 = sphi 0, %s88
    %s91 = sphi 0, %s90
    %s105 = sphi 0, %s91
    %s111 = sphi 0, %s113
    %s114 = sphi 0, %s111
    %s115 = sphi 0, %s114
    %s131 = sphi 0, %s115
  $region4: #{output_transition_forward.1} parent=0 // loop_header_branch
    %15 = sbr.rel (%p13) target = $region8
  $region5: #{output_transition_forward.1} parent=0 // loop_body
    %s17 = ssub.s32 %s12, 1
    %s18 = ssub.s32 %s12, 2
    %s19 = sadd.s32 %s12, 1
    %s20 = ssub.s32 %s12, %s19
    %p21 = scmp.eq.s32.totalorder %s20, 0
    %s23 = sadd.s32 %s22, 1
    %s24 = scalar_select %p21, %s22, %s23
    %p27 = pneg %p21
    %p28 = scmp.eq.s32.totalorder %s12, 1
    %p29 = por %p27, %p28
    %p30 = scmp.ne.s32.totalorder %s22, %s25
    %p31 = scmp.eq.s32.totalorder %s12, 0
    %p32 = por %p30, %p31
    %p33 = scmp.ne.s32.totalorder %s22, %s25
    %p34 = scmp.eq.s32.totalorder %s17, 1
    %p35 = por %p33, %p34
    %p36 = scmp.ne.s32.totalorder %s25, %s26
    %p37 = scmp.eq.s32.totalorder %s17, 0
    %p38 = por %p36, %p37
    %p39 = scmp.ne.s32.totalorder %s25, %s26
    %p40 = scmp.eq.s32.totalorder %s18, 1
    %p41 = por %p39, %p40
    %p43 = scmp.ne.s32.totalorder %s26, %s42
    %p44 = scmp.eq.s32.totalorder %s18, 0
    %p45 = por %p43, %p44
    %s47 = sadd.s32 %s46, 1
    %p50 = scmp.eq.s32.totalorder %s12, 1
    %p51 = scmp.ne.s32.totalorder %s46, %s48
    %p52 = scmp.eq.s32.totalorder %s12, 0
    %p53 = por %p51, %p52
    %p54 = scmp.ne.s32.totalorder %s46, %s48
    %p55 = scmp.eq.s32.totalorder %s17, 1
    %p56 = por %p54, %p55
    %p57 = scmp.ne.s32.totalorder %s48, %s49
    %p58 = scmp.eq.s32.totalorder %s17, 0
    %p59 = por %p57, %p58
    %p60 = scmp.ne.s32.totalorder %s48, %s49
    %p61 = scmp.eq.s32.totalorder %s18, 1
    %p62 = por %p60, %p61
    %p64 = scmp.ne.s32.totalorder %s49, %s63
    %p65 = scmp.eq.s32.totalorder %s18, 0
    %p66 = por %p64, %p65
    %s68 = sadd.s32 %s67, 1
    %p71 = scmp.eq.s32.totalorder %s12, 1
    %p72 = scmp.ne.s32.totalorder %s67, %s69
    %p73 = scmp.eq.s32.totalorder %s12, 0
    %p74 = por %p72, %p73
    %p75 = scmp.ne.s32.totalorder %s67, %s69
    %p76 = scmp.eq.s32.totalorder %s17, 1
    %p77 = por %p75, %p76
    %p78 = scmp.ne.s32.totalorder %s69, %s70
    %p79 = scmp.eq.s32.totalorder %s17, 0
    %p80 = por %p78, %p79
    %p81 = scmp.ne.s32.totalorder %s69, %s70
    %p82 = scmp.eq.s32.totalorder %s18, 1
    %p83 = por %p81, %p82
    %p85 = scmp.ne.s32.totalorder %s70, %s84
    %p86 = scmp.eq.s32.totalorder %s18, 0
    %p87 = por %p85, %p86
    %s89 = sadd.s32 %s88, 1
    %p92 = scmp.eq.s32.totalorder %s12, 1
    %p93 = scmp.ne.s32.totalorder %s88, %s90
    %p94 = scmp.eq.s32.totalorder %s12, 0
    %p95 = por %p93, %p94
    %p96 = scmp.ne.s32.totalorder %s88, %s90
    %p97 = scmp.eq.s32.totalorder %s17, 1
    %p98 = por %p96, %p97
    %p99 = scmp.ne.s32.totalorder %s90, %s91
    %p100 = scmp.eq.s32.totalorder %s17, 0
    %p101 = por %p99, %p100
    %p102 = scmp.ne.s32.totalorder %s90, %s91
    %p103 = scmp.eq.s32.totalorder %s18, 1
    %p104 = por %p102, %p103
    %p106 = scmp.ne.s32.totalorder %s91, %s105
    %p107 = scmp.eq.s32.totalorder %s18, 0
    %p108 = por %p106, %p107
    %s109 = ssub.s32 %s12, %s19
    %p110 = scmp.eq.s32.totalorder %s109, 0
    %s112 = sadd.s32 %s111, 1
    %s113 = scalar_select %p110, %s111, %s112
    %p116 = pneg %p110
    %p117 = scmp.eq.s32.totalorder %s12, 1
    %p118 = por %p116, %p117
    %p119 = scmp.ne.s32.totalorder %s111, %s114
    %p120 = scmp.eq.s32.totalorder %s12, 0
    %p121 = por %p119, %p120
    %p122 = scmp.ne.s32.totalorder %s111, %s114
    %p123 = scmp.eq.s32.totalorder %s17, 1
    %p124 = por %p122, %p123
    %p125 = scmp.ne.s32.totalorder %s114, %s115
    %p126 = scmp.eq.s32.totalorder %s17, 0
    %p127 = por %p125, %p126
    %p128 = scmp.ne.s32.totalorder %s114, %s115
    %p129 = scmp.eq.s32.totalorder %s18, 1
    %p130 = por %p128, %p129
    %p132 = scmp.ne.s32.totalorder %s115, %s131
    %p133 = scmp.eq.s32.totalorder %s18, 0
    %p134 = por %p132, %p133
    %p135 = scmp.le.s32.totalorder 1, %s12
    %p136 = scmp.lt.s32.totalorder %s12, 3
    %p137 = pnand %p135, %p136
    %p138 = pneg %p137
    // Predicated region
    $region9: #{output_transition_forward.1} parent=5 // pred_check
      _
    $region10: #{output_transition_forward.1} parent=5 // pred_check_branch
      %140 = sbr.rel (%p137) target = $region12
    $region11: #{output_transition_forward.1} parent=5 // pred_region
      %s141 = ssub.s32 %s12, 1
      // Predicated region
      $region13: #{output_transition_forward.1} parent=11 // pred_check
        %p142 = pneg %p59
      $region14: #{output_transition_forward.1} parent=11 // pred_check_branch
        %144 = sbr.rel (%p142) target = $region16
      $region15: #{output_transition_forward.1} parent=11 // pred_region
        _
      $region16: #{output_transition_forward.1} parent=11 // pred_fallthru
        _
      // Predicated region
      $region17: #{output_transition_forward.1} parent=11 // pred_check
        %p145 = pneg %p80
      $region18: #{output_transition_forward.1} parent=11 // pred_check_branch
        %147 = sbr.rel (%p145) target = $region20
      $region19: #{output_transition_forward.1} parent=11 // pred_region
        _
      $region20: #{output_transition_forward.1} parent=11 // pred_fallthru
        _
      // Predicated region
      $region21: #{output_transition_forward.1} parent=11 // pred_check
        %p148 = pneg %p101
      $region22: #{output_transition_forward.1} parent=11 // pred_check_branch
        %150 = sbr.rel (%p148) target = $region24
      $region23: #{output_transition_forward.1} parent=11 // pred_region
        _
      $region24: #{output_transition_forward.1} parent=11 // pred_fallthru
        _
    $region12: #{output_transition_forward.1} parent=5 // pred_fallthru
      _
    %p151 = scmp.lt.s32.totalorder %s12, 2
    // Predicated region
    $region25: #{output_transition_forward.1} parent=5 // pred_check
      %p152 = pneg %p151
    $region26: #{output_transition_forward.1} parent=5 // pred_check_branch
      %154 = sbr.rel (%p152) target = $region28
    $region27: #{output_transition_forward.1} parent=5 // pred_region
      // Predicated region
      $region29: #{output_transition_forward.1} parent=27 // pred_check
        %p155 = pneg %p32
      $region30: #{output_transition_forward.1} parent=27 // pred_check_branch
        %157 = sbr.rel (%p155) target = $region32
      $region31: #{output_transition_forward.1} parent=27 // pred_region
        %p158 = scmp.lt.s32.totalorder %s12, 1
        %s159 = scalar_select %p158, %s12, 1
        %s160 = smul.addr %s159, 26
        %s161 = smul.addr %s160, 8
        %s162 = scalar_lea.vmem %s0, %s161
      $region32: #{output_transition_forward.1} parent=27 // pred_fallthru
        _
    $region28: #{output_transition_forward.1} parent=5 // pred_fallthru
      _
    %p163 = scmp.le.s32.totalorder 1, %s12
    %p164 = scmp.lt.s32.totalorder %s12, 3
    %p165 = pnand %p163, %p164
    %p166 = pneg %p165
    // Predicated region
    $region33: #{output_transition_forward.1} parent=5 // pred_check
      _
    $region34: #{output_transition_forward.1} parent=5 // pred_check_branch
      %168 = sbr.rel (%p165) target = $region36
    $region35: #{output_transition_forward.1} parent=5 // pred_region
      %s169 = ssub.s32 %s12, 1
      %p170 = scmp.lt.s32.totalorder %s17, 1
      %s171 = scalar_select %p170, %s17, 1
      %s172 = smul.addr %s171, 26
      %s173 = smul.addr %s172, 8
      %s174 = scalar_lea.vmem %s0, %s173
      %p175 = pneg %p38
      %p176 = pneg %p35
      %p177 = pneg %p59
      %p178 = pneg %p56
      %p179 = pneg %p80
      %p180 = pneg %p77
      %p181 = pneg %p101
      %p182 = pneg %p98
      %p183 = pneg %p127
      %p184 = pneg %p124
      %p185 = scmp.lt.s32.totalorder %s17, 1
      %s186 = scalar_select %p185, %s17, 1
      %s187 = smul.addr %s186, 2
      %s188 = scalar_lea.vmem %s4, %s187
      %p189 = scmp.lt.s32.totalorder %s17, 1
      %s190 = scalar_select %p189, %s17, 1
      %s191 = smul.addr %s190, 26
      %s192 = smul.addr %s191, 8
      %s193 = scalar_lea.vmem %s0, %s192
      %p194 = scmp.lt.s32.totalorder %s17, 1
      %s195 = scalar_select %p194, %s17, 1
      %s196 = smul.addr %s195, 2
      %s197 = scalar_lea.vmem %s4, %s196
      %v198 = vld [vmem:[%s193] sm:$0xff]
      %v199 = vld [vmem:[%s193 + $0x8] sm:$0xff]
      %v200 = vld [vmem:[%s193 + $0x10] sm:$0xff]
      %v201 = vld [vmem:[%s193 + $0x18] sm:$0xff]
      %v202 = vld [vmem:[%s193 + $0x20] sm:$0xff]
      %v203 = vld [vmem:[%s193 + $0x28] sm:$0xff]
      %v204 = vld [vmem:[%s193 + $0x30] sm:$0xff]
      %v205 = vld [vmem:[%s193 + $0x38] sm:$0xff]
      %v206 = vld [vmem:[%s193 + $0x40] sm:$0xff]
      %v207 = vld [vmem:[%s193 + $0x48] sm:$0xff]
      %v208 = vld [vmem:[%s193 + $0x50] sm:$0xff]
      %v209 = vld [vmem:[%s193 + $0x58] sm:$0xff]
      %v210 = vld [vmem:[%s193 + $0x60] sm:$0xff]
      %v211 = vld [vmem:[%s193 + $0x68] sm:$0xff]
      %v212 = vld [vmem:[%s193 + $0x70] sm:$0xff]
      %v213 = vld [vmem:[%s193 + $0x78] sm:$0xff]
      %v214 = vld [vmem:[%s193 + $0x80] sm:$0xff]
      %v215 = vld [vmem:[%s193 + $0x88] sm:$0xff]
      %v216 = vld [vmem:[%s193 + $0x90] sm:$0xff]
      %v217 = vld [vmem:[%s193 + $0x98] sm:$0xff]
      %v218 = vld [vmem:[%s193 + $0xa0] sm:$0xff]
      %v219 = vld [vmem:[%s193 + $0xa8] sm:$0xff]
      %v220 = vld [vmem:[%s193 + $0xb0] sm:$0xff]
      %v221 = vld [vmem:[%s193 + $0xb8] sm:$0xff]
      %v222 = vld [vmem:[%s193 + $0xc0] sm:$0xf]
      %v223 = vld [vmem:[%s193 + $0xc8] sm:$0xf]
      %v224 = vld [vmem:[%s1] sm:$0x3]
      %vm225 = vcmask 818176
      %v227 = vsel %vm225, %v224, 0
      %vm229 = vcmask 1043456
      %v231 = vsel %vm229, %v222, 0
      %v234 = vsel %vm229, %v223, 0
      %236 = vmatpush.msra.mxu0 0.0
      %237 = vmatpush.msra.mxu0 0.0
      %238 = vmatpush.msra.mxu0 0.0
      %239 = vmatpush.msra.mxu0 %v231
      %240 = vmatpush.msra.mxu0 %v220
      %241 = vmatpush.msra.mxu0 %v218
      %242 = vmatpush.msra.mxu0 %v216
      %243 = vmatpush.msra.mxu0 %v214
      %244 = vmatpush.msra.mxu0 %v212
      %245 = vmatpush.msra.mxu0 %v210
      %246 = vmatpush.msra.mxu0 %v208
      %247 = vmatpush.msra.mxu0 %v206
      %248 = vmatpush.msra.mxu0 %v204
      %249 = vmatpush.msra.mxu0 %v202
      %250 = vmatpush.msra.mxu0 %v200
      %251 = vmatpush.msra.mxu0 %v198
      %252 = vmatmul.f32.gmra.mxu0 %v227
      %v253 = vpop.f32.mrf.mxu0
      %v254 = vadd.f32 0.0, %v253
      %255 = vdwg.mxu0
      %256 = vmatpush.msra.mxu0 0.0
      %257 = vmatpush.msra.mxu0 0.0
      %258 = vmatpush.msra.mxu0 0.0
      %259 = vmatpush.msra.mxu0 %v234
      %260 = vmatpush.msra.mxu0 %v221
      %261 = vmatpush.msra.mxu0 %v219
      %262 = vmatpush.msra.mxu0 %v217
      %263 = vmatpush.msra.mxu0 %v215
      %264 = vmatpush.msra.mxu0 %v213
      %265 = vmatpush.msra.mxu0 %v211
      %266 = vmatpush.msra.mxu0 %v209
      %267 = vmatpush.msra.mxu0 %v207
      %268 = vmatpush.msra.mxu0 %v205
      %269 = vmatpush.msra.mxu0 %v203
      %270 = vmatpush.msra.mxu0 %v201
      %271 = vmatpush.msra.mxu0 %v199
      %272 = vmatmul.f32.gmra.mxu0 %v227
      %v273 = vpop.f32.mrf.mxu0
      %v274 = vadd.f32 0.0, %v273
      %275 = vdwg.mxu0
      %vm276 = vcmask 1041408
      %v277 = vsel %vm276, %v254, 0.0
      %v278 = vsel %vm276, %v274, 0.0
      %v279 = vadd.f32 %v277, %v278
      %280 = vadd.xlane.f32.xlu0 %v279
      %v281 = vpop.xlane.xlu0 %280
      %v282 = vrcp.pop 256.0
      %v283 = vmul.f32 256.0, %v282
      %v284 = vsub.f32 1.0, %v283
      %v285 = vmul.f32 %v282, %v284
      %v286 = vadd.f32 %v282, %v285
      %vm287 = vweird.f32 %v282
      %v288 = vsel %vm287, %v282, %v286
      %v289 = vmul.f32 %v281, %v288
      %v290 = vsub.f32 %v254, %v289
      %v291 = vsub.f32 %v274, %v289
      %v292 = vmul.f32 %v290, %v290
      %v293 = vmul.f32 %v291, %v291
      %v294 = vsel %vm276, %v292, 0.0
      %v295 = vsel %vm276, %v293, 0.0
      %v296 = vadd.f32 %v294, %v295
      %297 = vadd.xlane.f32.xlu0 %v296
      %v298 = vpop.xlane.xlu0 %297
      %v299 = vmul.f32 %v298, %v288
      %v300 = vadd.f32 %v299, 1e-05
      %v301 = vrsqrt.pop %v300
      %v302 = vmul.f32 %v301, %v300
      %v303 = vmul.f32 %v302, %v301
      %v304 = vmul.f32 0.5, %v303
      %v305 = vsub.f32 1.5, %v304
      %v306 = vmul.f32 %v301, %v305
      %vm307 = vweird.f32 %v300
      %vm308 = vweird.f32 %v301
      %vm309 = vmor %vm307, %vm308
      %v310 = vsel %vm309, %v301, %v306
      %v311 = vmul.f32 %v290, %v310
      %v312 = vmul.f32 %v291, %v310
      %vm313 = vcmp.gt.f32.partialorder %v311, 0.0
      %vm314 = vcmp.gt.f32.partialorder %v312, 0.0
      %v315 = vmul.f32 %v311, 1.442695
      %v316 = vpow.pop %v315
      %v317 = vmul.f32 %v312, 1.442695
      %v318 = vpow.pop %v317
      %v319 = vsub.f32 %v316, 1.0
      %v320 = vsub.f32 %v318, 1.0
      %v321 = vsel %vm313, %v311, %v319
      %v322 = vsel %vm314, %v312, %v320
      %v323 = vld [vmem:[%s2] sm:$0x1]
      %v324 = vld [vmem:[#allocation2] sm:$0x1]
      %326 = vset.pattern.permute.xlu0 0
      %327 = vperm.xlu0 %326, %v324
      %v328 = vpop.permute.xlu0 %327
      %v330 = vperm.slane %v328, 0
      %vm331 = vcmask 15360
      %v333 = vsel %vm331, %v323, 0
      %v336 = vsel %vm276, %v321, 0
      %v339 = vsel %vm276, %v322, 0
      %341 = vmatpush.msra.mxu0 0.0
      %342 = vmatpush.msra.mxu0 0.0
      %343 = vmatpush.msra.mxu0 0.0
      %344 = vmatpush.msra.mxu0 0.0
      %345 = vmatpush.msra.mxu0 0.0
      %346 = vmatpush.msra.mxu0 0.0
      %347 = vmatpush.msra.mxu0 0.0
      %348 = vmatpush.msra.mxu0 0.0
      %349 = vmatpush.msra.mxu0 0.0
      %350 = vmatpush.msra.mxu0 0.0
      %351 = vmatpush.msra.mxu0 0.0
      %352 = vmatpush.msra.mxu0 0.0
      %353 = vmatpush.msra.mxu0 0.0
      %354 = vmatpush.msra.mxu0 0.0
      %355 = vmatpush.msra.mxu0 0.0
      %356 = vmatpush.msra.mxu0 %v336
      %357 = vmatmul.f32.gmra.mxu0 %v333
      %v358 = vpop.f32.mrf.mxu0
      %v359 = vadd.f32 %v330, %v358
      %360 = vdwg.mxu0
      %361 = vmatpush.msra.mxu0 0.0
      %362 = vmatpush.msra.mxu0 0.0
      %363 = vmatpush.msra.mxu0 0.0
      %364 = vmatpush.msra.mxu0 0.0
      %365 = vmatpush.msra.mxu0 0.0
      %366 = vmatpush.msra.mxu0 0.0
      %367 = vmatpush.msra.mxu0 0.0
      %368 = vmatpush.msra.mxu0 0.0
      %369 = vmatpush.msra.mxu0 0.0
      %370 = vmatpush.msra.mxu0 0.0
      %371 = vmatpush.msra.mxu0 0.0
      %372 = vmatpush.msra.mxu0 0.0
      %373 = vmatpush.msra.mxu0 0.0
      %374 = vmatpush.msra.mxu0 0.0
      %375 = vmatpush.msra.mxu0 0.0
      %376 = vmatpush.msra.mxu0 %v339
      %377 = vmatmul.f32.gmra.mxu0 %v333
      %v378 = vpop.f32.mrf.mxu0
      %v379 = vadd.f32 %v330, %v378
      %380 = vdwg.mxu0
      %v383 = vrot.slane %v379, 7
      %vm384 = vcmask 1040384
      %v385 = vsel %vm384, %v359, %v383
      %v387 = vlaneseq
      %vm388 = vcmp.ge.s32.totalorder %v387, 0
      %vm389 = vcmp.lt.s32.totalorder %v387, 256
      %vm390 = vmand %vm388, %vm389
      %391 = vst.msk [vmem:[%s197] sm:$0x3] %vm390, %v385
      %p392 = scmp.lt.s32.totalorder %s17, 1
      %s393 = scalar_select %p392, %s17, 1
      %s394 = smul.addr %s393, 2
      %s395 = scalar_lea.vmem %s4, %s394
      // Predicated region
      $region37: #{output_transition_forward.1} parent=35 // pred_check
        %p396 = pneg %p124
      $region38: #{output_transition_forward.1} parent=35 // pred_check_branch
        %398 = sbr.rel (%p396) target = $region40
      $region39: #{output_transition_forward.1} parent=35 // pred_region
        _
      $region40: #{output_transition_forward.1} parent=35 // pred_fallthru
        _
    $region36: #{output_transition_forward.1} parent=5 // pred_fallthru
      _
    %p399 = scmp.le.s32.totalorder 2, %s12
    // Predicated region
    $region41: #{output_transition_forward.1} parent=5 // pred_check
      %p400 = pneg %p399
    $region42: #{output_transition_forward.1} parent=5 // pred_check_branch
      %402 = sbr.rel (%p400) target = $region44
    $region43: #{output_transition_forward.1} parent=5 // pred_region
      %s403 = ssub.s32 %s12, 2
      // Predicated region
      $region45: #{output_transition_forward.1} parent=43 // pred_check
        %p404 = pneg %p130
      $region46: #{output_transition_forward.1} parent=43 // pred_check_branch
        %406 = sbr.rel (%p404) target = $region48
      $region47: #{output_transition_forward.1} parent=43 // pred_region
        %p407 = scmp.lt.s32.totalorder %s18, 1
        %s408 = scalar_select %p407, %s18, 1
        %s409 = smul.addr %s408, 2
        %s410 = scalar_lea.vmem %s4, %s409
      $region48: #{output_transition_forward.1} parent=43 // pred_fallthru
        _
    $region44: #{output_transition_forward.1} parent=5 // pred_fallthru
      _
  $region6: #{output_transition_forward.1} parent=0 // loop_footer
    %s16 = sadd.s32 1, %s12
  $region7: #{output_transition_forward.1} parent=0 // loop_footer_branch
    %11 = sbr.rel target = $region3
  $region8: #{output_transition_forward.1} parent=0 // loop_exit
    _

</llo_original>
